<compile_context>
chip_gen: v7x
topology: tpu7x:2x2x1
jax: 0.10.0
libtpu: 0.0.40
codegen_flags: <defaults>
</compile_context>

<pallas_src>
import functools

import jax
import jax.numpy as jnp
from jax.experimental import pallas as pl
from jax.experimental.pallas import tpu as pltpu


def _round_up(x, m):
    return ((x + m - 1) // m) * m


def _gcn_kernel(text_ref, adj_ref, w_ref, b_ref, out_ref, hidden_ref, *, ones_col):
    """One (batch-tile, row-tile) grid step.

    text_ref:   (tb, N_p, Fin)     input dtype (row-invariant block)
    adj_ref:    (tb, tn, N_p)      input dtype (row slab)
    w_ref:      (Fin, Fout_p)      bf16, zero-padded beyond Fout
    b_ref:      (1, Fout_p)        f32,  zero-padded beyond Fout
    out_ref:    (tb, tn, Fout_p)   f32
    hidden_ref: (tb, N_p, Fout_p)  bf16 VMEM scratch, carried across the row axis
    """
    tb, n_p, fin = text_ref.shape
    fout_p = w_ref.shape[1]

    # hidden = text @ W, computed once per batch step (row_id == 0), kept in bf16.
    @pl.when(pl.program_id(1) == 0)
    def _():
        text = text_ref[...].astype(jnp.bfloat16)                      # (tb, N_p, Fin)
        h = jnp.dot(text.reshape(tb * n_p, fin), w_ref[...],
                    preferred_element_type=jnp.float32)                # (tb*N_p, Fout_p)
        h = h.astype(jnp.bfloat16).reshape(tb, n_p, fout_p)
        # Plant 1.0 in a spare padded column so adj @ hidden also yields rowsum(adj)
        # there (f32 MXU accumulation -> exact), eliminating the separate reduction.
        col = jax.lax.broadcasted_iota(jnp.int32, (1, 1, fout_p), 2)
        hidden_ref[...] = jnp.where(col == ones_col, 1.0, h)

    adj = adj_ref[...].astype(jnp.bfloat16)                            # (tb, tn, N_p)
    agg = jnp.einsum("bnm,bmf->bnf", adj, hidden_ref[...],
                     preferred_element_type=jnp.float32)               # (tb, tn, Fout_p)

    denom = agg[..., ones_col:ones_col + 1] + 1.0                      # rowsum(adj) + 1
    out = agg * pl.reciprocal(denom, approx=True) + b_ref[...]
    out_ref[...] = out.astype(out_ref.dtype)


def graph_convolution(text, adj, weight, bias, *, vmem_limit_bytes=None):
    """text: [B, N, Fin], adj: [B, N, N], weight: [Fin, Fout], bias: [Fout] or [1, Fout]."""
    B, N, Fin = text.shape
    Fout = weight.shape[1]

    # VMEM budget: ~3/4 of physical (≈48 MiB on v7x, ≈96 MiB on v5e/v6e).
    if vmem_limit_bytes is None:
        try:
            phys = int(pltpu.get_tpu_info().vmem_capacity_bytes)
        except Exception:
            phys = 128 * 1024 * 1024
        vmem_limit_bytes = min(phys * 3 // 4, 100 * 1024 * 1024)
    vmem_limit_bytes = int(vmem_limit_bytes)

    # Lane padding: Fout -> multiple of 128, with at least one spare column for the
    # ones-column denom trick.  Fin stays unpadded (block covers the full extent).
    Fout_p = _round_up(Fout + 1, 128)
    ones_col = Fout

    # Node-axis tiling: bounded adj slab for large N, single tile otherwise.
    if N <= 512:
        N_p = _round_up(N, 16)          # 16: bf16 packs 2 rows per sublane
        tn = N_p
    else:
        tn = 256
        N_p = _round_up(N, tn)

    # Big tensors: avoid a wrapper-side padded/cast HBM round trip unless padding is
    # actually required; casting to bf16 happens inside the kernel.
    if N_p != N:
        text_in = jnp.zeros((B, N_p, Fin), text.dtype).at[:, :N, :].set(text)
        adj_in = jnp.zeros((B, N_p, N_p), adj.dtype).at[:, :N, :N].set(adj)
    else:
        text_in, adj_in = text, adj

    # Small parameters: pad/cast in the wrapper (negligible).
    w_p = jnp.zeros((Fin, Fout_p), jnp.bfloat16).at[:, :Fout].set(
        weight.astype(jnp.bfloat16))
    b_p = jnp.zeros((1, Fout_p), jnp.float32).at[0, :Fout].set(
        bias.reshape(-1).astype(jnp.float32))

    # Batch-tile selection against the real per-step VMEM footprint:
    # double-buffered BlockSpec buffers + scratch + live in-kernel temporaries.
    t_bytes = jnp.dtype(text_in.dtype).itemsize
    a_bytes = jnp.dtype(adj_in.dtype).itemsize
    per_b = (
        2 * N_p * Fin * t_bytes        # text block (double-buffered)
        + 2 * tn * N_p * a_bytes       # adj row slab (double-buffered)
        + 2 * tn * Fout_p * 4          # out block (double-buffered)
        + N_p * Fout_p * 2             # hidden scratch (bf16)
        + N_p * Fout_p * 4             # f32 result of the first dot (transient)
        + N_p * Fin * 2                # bf16 cast of text (transient)
        + tn * N_p * 2                 # bf16 cast of adj (transient)
        + tn * Fout_p * 4              # agg f32 (transient)
    )
    fixed = 2 * Fin * Fout_p * 2 + 2 * Fout_p * 4   # weight + bias blocks
    budget = max(vmem_limit_bytes - fixed, per_b)
    tb = max(1, min(B, budget // max(per_b, 1)))
    # Keep >= 2 steps along the parallel batch axis so both v7x TensorCores get work.
    tb = min(tb, max(1, -(-B // 2)))
    while B % tb:
        tb -= 1

    grid = (B // tb, N_p // tn)

    out_p = pl.pallas_call(
        functools.partial(_gcn_kernel, ones_col=ones_col),
        out_shape=jax.ShapeDtypeStruct((B, N_p, Fout_p), jnp.float32),
        grid_spec=pltpu.PrefetchScalarGridSpec(
            num_scalar_prefetch=0,
            grid=grid,
            in_specs=[
                pl.BlockSpec((tb, N_p, Fin), lambda b, r: (b, 0, 0)),   # text (row-inv.)
                pl.BlockSpec((tb, tn, N_p), lambda b, r: (b, r, 0)),    # adj row slab
                pl.BlockSpec((Fin, Fout_p), lambda b, r: (0, 0)),       # weight (shared)
                pl.BlockSpec((1, Fout_p), lambda b, r: (0, 0)),         # bias   (shared)
            ],
            out_specs=pl.BlockSpec((tb, tn, Fout_p), lambda b, r: (b, r, 0)),
            scratch_shapes=[pltpu.VMEM((tb, N_p, Fout_p), jnp.bfloat16)],
        ),
        compiler_params=pltpu.CompilerParams(
            # Row axis carries the hidden scratch across steps -> "arbitrary".
            dimension_semantics=("parallel", "arbitrary"),
            vmem_limit_bytes=vmem_limit_bytes,
        ),
    )(text_in, adj_in, w_p, b_p)

    return out_p[:, :N, :Fout]


def _reference(text, adj, weight, bias):
    adj = adj.astype(jnp.float32)
    hidden = jnp.matmul(text, weight)
    denom = jnp.sum(adj, axis=2, keepdims=True) + 1.0
    return jnp.matmul(adj, hidden) / denom + bias.reshape(1, 1, -1)


if __name__ == "__main__":
    # Small shapes consistent with the module: batch=2, nodes=16, in=32, out=32.
    B, N, Fin, Fout = 2, 16, 32, 32

    key = jax.random.PRNGKey(0)
    k_text, k_adj, k_w, k_b = jax.random.split(key, 4)

    text = jax.random.normal(k_text, (B, N, Fin), dtype=jnp.float32)
    # Adjacency: dense random 0/1 matrix (float after .float() in torch).
    adj = (jax.random.uniform(k_adj, (B, N, N)) > 0.5).astype(jnp.float32)

    # Deterministic synthetic parameters (module only declares shapes).
    weight = jax.random.normal(k_w, (Fin, Fout), dtype=jnp.float32) * 0.1
    bias = jax.random.normal(k_b, (Fout,), dtype=jnp.float32) * 0.1

    out = jax.block_until_ready(graph_convolution(text, adj, weight, bias))
    ref = _reference(text, adj, weight, bias)

    assert out.shape == (B, N, Fout)
    # bf16 MXU inputs (f32 accumulation) + approx reciprocal -> relaxed tolerance
    # vs. the pure-f32 reference; observed error is ~1e-3.
    assert jnp.allclose(out, ref, atol=2e-2, rtol=2e-2), "mismatch vs reference"

    print("KERNEL_OK")
</pallas_src>

<mosaic_0001>
module attributes {stable_mosaic.version = 11 : i64} {
  func.func @_gcn_kernel(%arg0: i32, %arg1: i32, %arg2: memref<1x16x32xf32, #tpu.memory_space<vmem>>, %arg3: memref<1x16x16xf32, #tpu.memory_space<vmem>>, %arg4: memref<32x128xbf16, #tpu.memory_space<vmem>>, %arg5: memref<1x128xf32, #tpu.memory_space<vmem>>, %arg6: memref<1x16x128xf32, #tpu.memory_space<vmem>>, %arg7: memref<1x16x128xbf16, #tpu.memory_space<vmem>>) attributes {dimension_semantics = [#tpu.dimension_semantics<parallel>, #tpu.dimension_semantics<arbitrary>], iteration_bounds = array<i64: 2, 1>, scalar_prefetch = 0 : i64, scratch_operands = 1 : i64, tpu.core_type = #tpu.core_type<tc>, window_params = [{transform_indices = @transform_0, window_bounds = array<i64: 1, 16, 32>}, {transform_indices = @transform_1, window_bounds = array<i64: 1, 16, 16>}, {pipeline_mode = #tpu.pipeline_mode<synchronous>, transform_indices = @transform_2, window_bounds = array<i64: 32, 128>}, {pipeline_mode = #tpu.pipeline_mode<synchronous>, transform_indices = @transform_3, window_bounds = array<i64: 1, 128>}, {transform_indices = @transform_4, window_bounds = array<i64: 1, 16, 128>}]} {
    %c0_i32 = arith.constant 0 : i32
    %0 = arith.cmpi eq, %arg1, %c0_i32 : i32
    %1 = arith.extui %0 : i1 to i32
    %c0_i32_0 = arith.constant 0 : i32
    %2 = arith.cmpi ne, %1, %c0_i32_0 : i32
    scf.if %2 {
      %c0_12 = arith.constant 0 : index
      %c0_13 = arith.constant 0 : index
      %c0_14 = arith.constant 0 : index
      %18 = vector.load %arg2[%c0_12, %c0_13, %c0_14] : memref<1x16x32xf32, #tpu.memory_space<vmem>>, vector<1x16x32xf32>
      %19 = arith.truncf %18 : vector<1x16x32xf32> to vector<1x16x32xbf16>
      %20 = vector.shape_cast %19 : vector<1x16x32xbf16> to vector<16x32xbf16>
      %c0_15 = arith.constant 0 : index
      %c0_16 = arith.constant 0 : index
      %21 = vector.load %arg4[%c0_15, %c0_16] : memref<32x128xbf16, #tpu.memory_space<vmem>>, vector<32x128xbf16>
      %cst_17 = arith.constant dense<0.000000e+00> : vector<16x128xf32>
      %22 = tpu.matmul %20, %21, %cst_17 {dimension_numbers = #tpu.dot_dimension_numbers<[1], [0], [0], [1], [0, 0, 1, 1], [], []>} : vector<16x32xbf16>, vector<32x128xbf16>, vector<16x128xf32> -> vector<16x128xf32>
      %23 = arith.truncf %22 : vector<16x128xf32> to vector<16x128xbf16>
      %24 = vector.shape_cast %23 : vector<16x128xbf16> to vector<1x16x128xbf16>
      %25 = tpu.iota {dimensions = array<i32: 2>} : vector<1x1x128xi32>
      %c32_i32 = arith.constant 32 : i32
      %26 = vector.broadcast %c32_i32 : i32 to vector<1x1x128xi32>
      %27 = arith.cmpi eq, %25, %26 : vector<1x1x128xi32>
      %cst_18 = arith.constant 1.000000e+00 : f32
      %28 = arith.truncf %cst_18 : f32 to bf16
      %29 = vector.shape_cast %27 : vector<1x1x128xi1> to vector<1x1x128xi1>
      %30 = vector.broadcast %29 : vector<1x1x128xi1> to vector<1x16x128xi1>
      %31 = vector.broadcast %28 : bf16 to vector<1x16x128xbf16>
      %32 = arith.select %30, %31, %24 : vector<1x16x128xi1>, vector<1x16x128xbf16>
      %c0_19 = arith.constant 0 : index
      %c0_20 = arith.constant 0 : index
      %c0_21 = arith.constant 0 : index
      %33 = vector.load %arg7[%c0_19, %c0_20, %c0_21] : memref<1x16x128xbf16, #tpu.memory_space<vmem>>, vector<1x16x128xbf16>
      tpu.vector_store %arg7[%c0_19, %c0_20, %c0_21], %32 {strides = array<i32>} : memref<1x16x128xbf16, #tpu.memory_space<vmem>>, vector<1x16x128xbf16>,
    } else {
    }
    %c0 = arith.constant 0 : index
    %c0_1 = arith.constant 0 : index
    %c0_2 = arith.constant 0 : index
    %3 = vector.load %arg3[%c0, %c0_1, %c0_2] : memref<1x16x16xf32, #tpu.memory_space<vmem>>, vector<1x16x16xf32>
    %4 = arith.truncf %3 : vector<1x16x16xf32> to vector<1x16x16xbf16>
    %c0_3 = arith.constant 0 : index
    %c0_4 = arith.constant 0 : index
    %c0_5 = arith.constant 0 : index
    %5 = vector.load %arg7[%c0_3, %c0_4, %c0_5] : memref<1x16x128xbf16, #tpu.memory_space<vmem>>, vector<1x16x128xbf16>
    "tpu.trace_start"() <{level = 10 : i32, message = "bnm,bmf->bnf"}> : () -> ()
    %cst = arith.constant dense<0.000000e+00> : vector<1x16x128xf32>
    %6 = tpu.matmul %4, %5, %cst {dimension_numbers = #tpu.dot_dimension_numbers<[2], [1], [1], [2], [0, 0, 0, 1, 1, 2], [0], [0]>} : vector<1x16x16xbf16>, vector<1x16x128xbf16>, vector<1x16x128xf32> -> vector<1x16x128xf32>
    "tpu.trace_stop"() : () -> ()
    %7 = vector.extract_strided_slice %6 {offsets = [0, 0, 32], sizes = [1, 16, 1], strides = [1, 1, 1]} : vector<1x16x128xf32> to vector<1x16x1xf32>
    %cst_6 = arith.constant 1.000000e+00 : f32
    %8 = vector.broadcast %cst_6 : f32 to vector<1x16x1xf32>
    %9 = arith.addf %7, %8 : vector<1x16x1xf32>
    %10 = tpu.reciprocal %9 {approx = true} : vector<1x16x1xf32> -> vector<1x16x1xf32>
    %11 = vector.broadcast %10 : vector<1x16x1xf32> to vector<1x16x128xf32>
    %12 = arith.mulf %6, %11 : vector<1x16x128xf32>
    %c0_7 = arith.constant 0 : index
    %c0_8 = arith.constant 0 : index
    %13 = vector.load %arg5[%c0_7, %c0_8] : memref<1x128xf32, #tpu.memory_space<vmem>>, vector<1x128xf32>
    %14 = vector.shape_cast %13 : vector<1x128xf32> to vector<1x1x128xf32>
    %15 = vector.broadcast %14 : vector<1x1x128xf32> to vector<1x16x128xf32>
    %16 = arith.addf %12, %15 : vector<1x16x128xf32>
    %c0_9 = arith.constant 0 : index
    %c0_10 = arith.constant 0 : index
    %c0_11 = arith.constant 0 : index
    %17 = vector.load %arg6[%c0_9, %c0_10, %c0_11] : memref<1x16x128xf32, #tpu.memory_space<vmem>>, vector<1x16x128xf32>
    tpu.vector_store %arg6[%c0_9, %c0_10, %c0_11], %16 {strides = array<i32>} : memref<1x16x128xf32, #tpu.memory_space<vmem>>, vector<1x16x128xf32>,
    return
  }
  func.func @transform_0(%arg0: i32, %arg1: i32) -> (i32, i32, i32) {
    %c0_i32 = arith.constant 0 : i32
    %c0_i32_0 = arith.constant 0 : i32
    %c0_i32_1 = arith.constant 0 : i32
    return %arg0, %c0_i32, %c0_i32_0 : i32, i32, i32
  }
  func.func @transform_1(%arg0: i32, %arg1: i32) -> (i32, i32, i32) {
    %c0_i32 = arith.constant 0 : i32
    %c0_i32_0 = arith.constant 0 : i32
    return %arg0, %arg1, %c0_i32 : i32, i32, i32
  }
  func.func @transform_2(%arg0: i32, %arg1: i32) -> (i32, i32) {
    %c0_i32 = arith.constant 0 : i32
    %c0_i32_0 = arith.constant 0 : i32
    %c0_i32_1 = arith.constant 0 : i32
    return %c0_i32, %c0_i32_0 : i32, i32
  }
  func.func @transform_3(%arg0: i32, %arg1: i32) -> (i32, i32) {
    %c0_i32 = arith.constant 0 : i32
    %c0_i32_0 = arith.constant 0 : i32
    %c0_i32_1 = arith.constant 0 : i32
    return %c0_i32, %c0_i32_0 : i32, i32
  }
  func.func @transform_4(%arg0: i32, %arg1: i32) -> (i32, i32, i32) {
    %c0_i32 = arith.constant 0 : i32
    %c0_i32_0 = arith.constant 0 : i32
    return %arg0, %arg1, %c0_i32 : i32, i32, i32
  }
}

</mosaic_0001>

<llo_original>
// kernel: tpu_custom_call.1
$region0: #{tpu_custom_call.1}
  #allocation0 [shape = 'u32[]', space=smem, size = 0x4, offset = 0x4, fixed_abs, tag = 'smem constant byte address 0x4 - core index']
  #allocation1 [shape = 'u32[144,128]{1,0:T(1,128)}', space=vmem, size = 0x12000, scoped, tag = 'internal scratch']
  #allocation2 [shape = 'bf16[1,16,128]{2,1,0:T(16,128)(2,1)}', space=vmem, size = 0x1000, scoped, tag = 'scratch operand']
  %s0 = inlined_call_operand.hbm [shape: f32[2,16,32], index: 0, kind: input, shape index: {}]
  %s1 = inlined_call_operand.hbm [shape: f32[2,16,16], index: 1, kind: input, shape index: {}]
  %s2 = inlined_call_operand.hbm [shape: bf16[32,128], index: 2, kind: input, shape index: {}]
  %s3 = inlined_call_operand.hbm [shape: f32[1,128], index: 3, kind: input, shape index: {}]
  %s4 = inlined_call_operand.hbm [shape: f32[2,16,128], index: 4, kind: output, shape index: {}]
  %s5 = sld [smem:[#allocation0]]
  $region69: #{tpu_custom_call.1} parent=0
    _
  %s7 = ssub.s32 1, %s5
  %s8 = scalar_select 0, %s7, %s5
  $region1: #{tpu_custom_call.1} parent=0
    #allocation3 [shape = 'u8[16384]{0}', space=vmem, size = 0x4000, scoped, tag = 'input window, operand 0']
    #allocation4 [shape = 's32[2]{0}', space=sflag, size = 0x8, scoped, tag = 'scoped memory for tpu_custom_call.1']
    #allocation5 [shape = 's32[2]{0}', space=sflag, size = 0x8, scoped, tag = 'scoped memory for tpu_custom_call.1']
    #allocation6 [shape = 'u8[16384]{0}', space=vmem, size = 0x4000, scoped, tag = 'input window, operand 1']
    #allocation7 [shape = 's32[2]{0}', space=sflag, size = 0x8, scoped, tag = 'scoped memory for tpu_custom_call.1']
    #allocation8 [shape = 'u8[8192]{0}', space=vmem, size = 0x2000, scoped, tag = 'input window, operand 2, single buffered']
    #allocation9 [shape = 'u8[512]{0}', space=vmem, size = 0x400, scoped, tag = 'input window, operand 3, single buffered']
    #allocation10 [shape = 's32[1]{0}', space=sflag, size = 0x4, scoped, tag = 'scoped memory for tpu_custom_call.1']
    #allocation11 [shape = 'u8[16384]{0}', space=vmem, size = 0x4000, scoped, tag = 'output window, operand 0']
    %9 = vsyncpa [#allocation4], 0
    %s10 = scalar_lea.sflag [#allocation4], 1
    %11 = vsyncpa %s10, 0
    %12 = vsyncpa [#allocation7], 0
    %s13 = scalar_lea.sflag [#allocation7], 1
    %14 = vsyncpa %s13, 0
    %15 = vsyncpa [#allocation10], 0
    %16 = vsyncpa [#allocation5], 0
    %s17 = scalar_lea.sflag [#allocation5], 1
    %18 = vsyncpa %s17, 0
    loop: start=0, step=1, limit=4
    $region2: #{tpu_custom_call.1} parent=1 // loop_pre_header
      _
    $region3: #{tpu_custom_call.1} parent=1 // loop_header
      %s20 = sphi 0, %s24
      %p21 = scmp.ge.s32.totalorder %s20, 4
      %s27 = sphi 0, %s39
      %s28 = sphi 0, %s35
      %s29 = sphi 0, %s27
      %s30 = sphi 0, %s28
      %s31 = sphi 0, %s29
      %s32 = sphi 0, %s30
      %s42 = sphi 0, %s44
      %s45 = sphi 0, %s42
      %s46 = sphi 0, %s45
      %s62 = sphi 0, %s46
      %s70 = sphi 0, %s72
      %s73 = sphi 0, %s70
      %s74 = sphi 0, %s73
      %s90 = sphi 0, %s74
      %s94 = sphi 0, %s94
      %s96 = sphi 0, %s94
      %s97 = sphi 0, %s96
      %s111 = sphi 0, %s97
      %s115 = sphi 0, %s115
      %s117 = sphi 0, %s115
      %s118 = sphi 0, %s117
      %s132 = sphi 0, %s118
      %s140 = sphi 0, %s142
      %s143 = sphi 0, %s140
      %s144 = sphi 0, %s143
      %s160 = sphi 0, %s144
    $region4: #{tpu_custom_call.1} parent=1 // loop_header_branch
      %23 = sbr.rel (%p21) target = $region8
    $region5: #{tpu_custom_call.1} parent=1 // loop_body
      %s25 = ssub.s32 %s20, 1
      %s26 = ssub.s32 %s20, 2
      %s33 = sadd.s32 1, %s28
      %p34 = scmp.ge.s32.totalorder %s33, 1
      %s35 = scalar_select %p34, 0, %s33
      %s36 = sadd.s32 1, %s27
      %s37 = scalar_select %p34, %s36, %s27
      %p38 = scmp.ge.s32.totalorder %s37, 2
      %s39 = scalar_select %p38, 0, %s37
      %s40 = ssub.s32 %s27, %s39
      %p41 = scmp.eq.s32.totalorder %s40, 0
      %s43 = sadd.s32 %s42, 1
      %s44 = scalar_select %p41, %s42, %s43
      %p47 = pneg %p41
      %p48 = scmp.eq.s32.totalorder %s20, 1
      %p49 = por %p47, %p48
      %p50 = scmp.ne.s32.totalorder %s42, %s45
      %p51 = scmp.eq.s32.totalorder %s20, 0
      %p52 = por %p50, %p51
      %p53 = scmp.ne.s32.totalorder %s42, %s45
      %p54 = scmp.eq.s32.totalorder %s25, 1
      %p55 = por %p53, %p54
      %p56 = scmp.ne.s32.totalorder %s45, %s46
      %p57 = scmp.eq.s32.totalorder %s25, 0
      %p58 = por %p56, %p57
      %p59 = scmp.ne.s32.totalorder %s45, %s46
      %p60 = scmp.eq.s32.totalorder %s26, 1
      %p61 = por %p59, %p60
      %p63 = scmp.ne.s32.totalorder %s46, %s62
      %p64 = scmp.eq.s32.totalorder %s26, 0
      %p65 = por %p63, %p64
      %s66 = ssub.s32 %s27, %s39
      %s67 = ssub.s32 %s28, %s35
      %s68 = sor.u32 %s66, %s67
      %p69 = scmp.eq.s32.totalorder %s68, 0
      %s71 = sadd.s32 %s70, 1
      %s72 = scalar_select %p69, %s70, %s71
      %p75 = pneg %p69
      %p76 = scmp.eq.s32.totalorder %s20, 1
      %p77 = por %p75, %p76
      %p78 = scmp.ne.s32.totalorder %s70, %s73
      %p79 = scmp.eq.s32.totalorder %s20, 0
      %p80 = por %p78, %p79
      %p81 = scmp.ne.s32.totalorder %s70, %s73
      %p82 = scmp.eq.s32.totalorder %s25, 1
      %p83 = por %p81, %p82
      %p84 = scmp.ne.s32.totalorder %s73, %s74
      %p85 = scmp.eq.s32.totalorder %s25, 0
      %p86 = por %p84, %p85
      %p87 = scmp.ne.s32.totalorder %s73, %s74
      %p88 = scmp.eq.s32.totalorder %s26, 1
      %p89 = por %p87, %p88
      %p91 = scmp.ne.s32.totalorder %s74, %s90
      %p92 = scmp.eq.s32.totalorder %s26, 0
      %p93 = por %p91, %p92
      %s95 = sadd.s32 %s94, 1
      %p98 = scmp.eq.s32.totalorder %s20, 1
      %p99 = scmp.ne.s32.totalorder %s94, %s96
      %p100 = scmp.eq.s32.totalorder %s20, 0
      %p101 = por %p99, %p100
      %p102 = scmp.ne.s32.totalorder %s94, %s96
      %p103 = scmp.eq.s32.totalorder %s25, 1
      %p104 = por %p102, %p103
      %p105 = scmp.ne.s32.totalorder %s96, %s97
      %p106 = scmp.eq.s32.totalorder %s25, 0
      %p107 = por %p105, %p106
      %p108 = scmp.ne.s32.totalorder %s96, %s97
      %p109 = scmp.eq.s32.totalorder %s26, 1
      %p110 = por %p108, %p109
      %p112 = scmp.ne.s32.totalorder %s97, %s111
      %p113 = scmp.eq.s32.totalorder %s26, 0
      %p114 = por %p112, %p113
      %s116 = sadd.s32 %s115, 1
      %p119 = scmp.eq.s32.totalorder %s20, 1
      %p120 = scmp.ne.s32.totalorder %s115, %s117
      %p121 = scmp.eq.s32.totalorder %s20, 0
      %p122 = por %p120, %p121
      %p123 = scmp.ne.s32.totalorder %s115, %s117
      %p124 = scmp.eq.s32.totalorder %s25, 1
      %p125 = por %p123, %p124
      %p126 = scmp.ne.s32.totalorder %s117, %s118
      %p127 = scmp.eq.s32.totalorder %s25, 0
      %p128 = por %p126, %p127
      %p129 = scmp.ne.s32.totalorder %s117, %s118
      %p130 = scmp.eq.s32.totalorder %s26, 1
      %p131 = por %p129, %p130
      %p133 = scmp.ne.s32.totalorder %s118, %s132
      %p134 = scmp.eq.s32.totalorder %s26, 0
      %p135 = por %p133, %p134
      %s136 = ssub.s32 %s27, %s39
      %s137 = ssub.s32 %s28, %s35
      %s138 = sor.u32 %s136, %s137
      %p139 = scmp.eq.s32.totalorder %s138, 0
      %s141 = sadd.s32 %s140, 1
      %s142 = scalar_select %p139, %s140, %s141
      %p145 = pneg %p139
      %p146 = scmp.eq.s32.totalorder %s20, 1
      %p147 = por %p145, %p146
      %p148 = scmp.ne.s32.totalorder %s140, %s143
      %p149 = scmp.eq.s32.totalorder %s20, 0
      %p150 = por %p148, %p149
      %p151 = scmp.ne.s32.totalorder %s140, %s143
      %p152 = scmp.eq.s32.totalorder %s25, 1
      %p153 = por %p151, %p152
      %p154 = scmp.ne.s32.totalorder %s143, %s144
      %p155 = scmp.eq.s32.totalorder %s25, 0
      %p156 = por %p154, %p155
      %p157 = scmp.ne.s32.totalorder %s143, %s144
      %p158 = scmp.eq.s32.totalorder %s26, 1
      %p159 = por %p157, %p158
      %p161 = scmp.ne.s32.totalorder %s144, %s160
      %p162 = scmp.eq.s32.totalorder %s26, 0
      %p163 = por %p161, %p162
      %p164 = scmp.le.s32.totalorder 1, %s20
      %p165 = scmp.lt.s32.totalorder %s20, 3
      %p166 = pnand %p164, %p165
      %p167 = pneg %p166
      // Predicated region
      $region9: #{tpu_custom_call.1} parent=5 // pred_check
        _
      $region10: #{tpu_custom_call.1} parent=5 // pred_check_branch
        %169 = sbr.rel (%p166) target = $region12
      $region11: #{tpu_custom_call.1} parent=5 // pred_region
        %s170 = ssub.s32 %s20, 1
        // Predicated region
        $region13: #{tpu_custom_call.1} parent=11 // pred_check
          %p171 = pneg %p107
        $region14: #{tpu_custom_call.1} parent=11 // pred_check_branch
          %173 = sbr.rel (%p171) target = $region16
        $region15: #{tpu_custom_call.1} parent=11 // pred_region
          %s175 = ssub.s32 256, 256
          %176 = vsyncadd [#allocation7], %s175
          %s177 = sshll.u32 [#allocation8], 4
          %s178 = int_to_ptr.vmem [resolvable:$true] %s177
          %183 = dma.hbm_to_vmem [thread:$0]  %s2, 256, %s178, [#allocation7], 64, 64, 4
        $region16: #{tpu_custom_call.1} parent=11 // pred_fallthru
          _
        // Predicated region
        $region17: #{tpu_custom_call.1} parent=11 // pred_check
          %p184 = pneg %p128
        $region18: #{tpu_custom_call.1} parent=11 // pred_check_branch
          %186 = sbr.rel (%p184) target = $region20
        $region19: #{tpu_custom_call.1} parent=11 // pred_region
          %s188 = ssub.s32 16, 16
          %189 = vsyncadd [#allocation10], %s188
          %s191 = sshll.u32 [#allocation9], 4
          %s192 = int_to_ptr.vmem [resolvable:$true] %s191
          %194 = dma.hbm_to_vmem [thread:$0]  %s3, 16, %s192, [#allocation10]
        $region20: #{tpu_custom_call.1} parent=11 // pred_fallthru
          _
      $region12: #{tpu_custom_call.1} parent=5 // pred_fallthru
        _
      %p195 = scmp.lt.s32.totalorder %s20, 2
      // Predicated region
      $region21: #{tpu_custom_call.1} parent=5 // pred_check
        %p196 = pneg %p195
      $region22: #{tpu_custom_call.1} parent=5 // pred_check_branch
        %198 = sbr.rel (%p196) target = $region24
      $region23: #{tpu_custom_call.1} parent=5 // pred_region
        // Predicated region
        $region25: #{tpu_custom_call.1} parent=23 // pred_check
          %p199 = pneg %p52
        $region26: #{tpu_custom_call.1} parent=23 // pred_check_branch
          %201 = sbr.rel (%p199) target = $region28
        $region27: #{tpu_custom_call.1} parent=23 // pred_region
          %s202 = sand.u32 %s42, 1
          %s203 = scalar_lea.sflag [#allocation4], %s202
          %s204 = sand.u32 %s42, 1
          %s205 = smul.addr %s204, 16
          %s206 = scalar_lea.vmem [#allocation3], %s205
          %s208 = ssub.s32 256, 256
          %209 = vsyncadd %s203, %s208
          %s210 = smul.addr %s27, 2
          %s211 = smul.addr %s210, 128
          %s212 = scalar_lea.hbm %s0, %s211
          %s213 = sshll.u32 %s206, 4
          %s214 = int_to_ptr.vmem [resolvable:$true] %s213
          %219 = dma.hbm_to_vmem [thread:$0]  %s212, 256, %s214, %s203, 128, 128, 8
        $region28: #{tpu_custom_call.1} parent=23 // pred_fallthru
          _
        // Predicated region
        $region29: #{tpu_custom_call.1} parent=23 // pred_check
          %p220 = pneg %p80
        $region30: #{tpu_custom_call.1} parent=23 // pred_check_branch
          %222 = sbr.rel (%p220) target = $region32
        $region31: #{tpu_custom_call.1} parent=23 // pred_region
          %s223 = sand.u32 %s20, 1
          %s224 = scalar_lea.sflag [#allocation7], %s223
          %s225 = sand.u32 %s70, 1
          %s226 = smul.addr %s225, 16
          %s227 = scalar_lea.vmem [#allocation6], %s226
          %s228 = smul.u32 2, %s28
          %s230 = ssub.s32 256, 256
          %231 = vsyncadd %s224, %s230
          %s232 = smul.addr %s27, 2
          %s233 = sadd.s32 %s228, %s232
          %s234 = smul.addr %s233, 128
          %s235 = scalar_lea.hbm %s1, %s234
          %s236 = sshll.u32 %s227, 4
          %s237 = int_to_ptr.vmem [resolvable:$true] %s236
          %242 = dma.hbm_to_vmem [thread:$0]  %s235, 256, %s237, %s224, 128, 128, 8
        $region32: #{tpu_custom_call.1} parent=23 // pred_fallthru
          _
      $region24: #{tpu_custom_call.1} parent=5 // pred_fallthru
        _
      %p243 = scmp.le.s32.totalorder 1, %s20
      %p244 = scmp.lt.s32.totalorder %s20, 3
      %p245 = pnand %p243, %p244
      %p246 = pneg %p245
      // Predicated region
      $region33: #{tpu_custom_call.1} parent=5 // pred_check
        _
      $region34: #{tpu_custom_call.1} parent=5 // pred_check_branch
        %248 = sbr.rel (%p245) target = $region36
      $region35: #{tpu_custom_call.1} parent=5 // pred_region
        %s249 = ssub.s32 %s20, 1
        %s250 = sand.u32 %s45, 1
        %s251 = scalar_lea.sflag [#allocation4], %s250
        %s252 = sand.u32 %s45, 1
        %s253 = smul.addr %s252, 16
        %s254 = scalar_lea.vmem [#allocation3], %s253
        // Predicated region
        $region37: #{tpu_custom_call.1} parent=35 // pred_check
          %p255 = pneg %p58
        $region38: #{tpu_custom_call.1} parent=35 // pred_check_branch
          %257 = sbr.rel (%p255) target = $region40
        $region39: #{tpu_custom_call.1} parent=35 // pred_region
          %258 = dma.done %s251, 256
        $region40: #{tpu_custom_call.1} parent=35 // pred_fallthru
          _
        %s259 = sand.u32 %s25, 1
        %s260 = scalar_lea.sflag [#allocation7], %s259
        %s261 = sand.u32 %s73, 1
        %s262 = smul.addr %s261, 16
        %s263 = scalar_lea.vmem [#allocation6], %s262
        // Predicated region
        $region41: #{tpu_custom_call.1} parent=35 // pred_check
          %p264 = pneg %p86
        $region42: #{tpu_custom_call.1} parent=35 // pred_check_branch
          %266 = sbr.rel (%p264) target = $region44
        $region43: #{tpu_custom_call.1} parent=35 // pred_region
          %267 = dma.done %s260, 256
        $region44: #{tpu_custom_call.1} parent=35 // pred_fallthru
          _
        // Predicated region
        $region45: #{tpu_custom_call.1} parent=35 // pred_check
          %p268 = pneg %p107
        $region46: #{tpu_custom_call.1} parent=35 // pred_check_branch
          %270 = sbr.rel (%p268) target = $region48
        $region47: #{tpu_custom_call.1} parent=35 // pred_region
          %271 = dma.done [#allocation7], 256
        $region48: #{tpu_custom_call.1} parent=35 // pred_fallthru
          _
        // Predicated region
        $region49: #{tpu_custom_call.1} parent=35 // pred_check
          %p272 = pneg %p128
        $region50: #{tpu_custom_call.1} parent=35 // pred_check_branch
          %274 = sbr.rel (%p272) target = $region52
        $region51: #{tpu_custom_call.1} parent=35 // pred_region
          %275 = dma.done [#allocation10], 16
        $region52: #{tpu_custom_call.1} parent=35 // pred_fallthru
          _
        %s276 = sand.u32 %s45, 1
        %s277 = scalar_lea.sflag [#allocation4], %s276
        %s278 = sand.u32 %s45, 1
        %s279 = smul.addr %s278, 16
        %s280 = scalar_lea.vmem [#allocation3], %s279
        %p281 = pneg %p58
        %p282 = pneg %p55
        %s283 = sand.u32 %s25, 1
        %s284 = scalar_lea.sflag [#allocation7], %s283
        %s285 = sand.u32 %s73, 1
        %s286 = smul.addr %s285, 16
        %s287 = scalar_lea.vmem [#allocation6], %s286
        %p288 = pneg %p86
        %p289 = pneg %p83
        %p290 = pneg %p107
        %p291 = pneg %p104
        %p292 = pneg %p128
        %p293 = pneg %p125
        %p294 = pneg %p156
        %p295 = pneg %p153
        %s296 = sand.u32 %s143, 1
        %s297 = scalar_lea.sflag [#allocation5], %s296
        %s298 = sand.u32 %s143, 1
        %s299 = smul.addr %s298, 16
        %s300 = scalar_lea.vmem [#allocation11], %s299
        %s301 = smul.u32 2, %s30
        %s302 = smul.u32 2, %s30
        %p307 = scmp.eq.s32.totalorder %s30, 0
        // Predicated region
        $region53: #{tpu_custom_call.1} parent=35 // pred_check
          %p308 = pneg %p307
        $region54: #{tpu_custom_call.1} parent=35 // pred_check_branch
          %310 = sbr.rel (%p308) target = $region56
        $region55: #{tpu_custom_call.1} parent=35 // pred_region
          %v311 = vld [vmem:[%s254] sm:$0xff]
          %v312 = vld [vmem:[%s254 + $0x8] sm:$0xff]
          %v313 = vpack.c.bf16 %v312, %v311
          %v314 = vld [vmem:[#allocation8] sm:$0xf]
          %v315 = vld [vmem:[#allocation8 + $0x4] sm:$0xf]
          %v316 = vld [vmem:[#allocation8 + $0x8] sm:$0xf]
          %v317 = vld [vmem:[#allocation8 + $0xc] sm:$0xf]
          %v322 = vunpack.c.l.b16 %v314
          %v323 = vunpack.c.l.b16 %v315
          %v324 = vunpack.c.l.b16 %v316
          %v325 = vunpack.c.l.b16 %v317
          %v326 = vpack.c.b16 %v323, %v322
          %v327 = vpack.c.b16 %v325, %v324
          %vm330 = vcmask 261120
          %v332 = vsel %vm330, %v313, 0
          %334 = vmatprep.subr.bf16.mxu0 0
          %335 = vmatpush1.bf16.msra.mxu0 %v326
          %336 = vmatprep.subr.bf16.mxu0 0
          %337 = vmatpush1.bf16.msra.mxu0 %v327
          %338 = vmatprep.subr.bf16.mxu0 0
          %339 = vmatpush1.bf16.msra.mxu0 0
          %340 = vmatprep.subr.bf16.mxu0 0
          %341 = vmatpush1.bf16.msra.mxu0 0
          %342 = vmatprep.subr.bf16.mxu0 0
          %343 = vmatpush1.bf16.msra.mxu0 0
          %344 = vmatprep.subr.bf16.mxu0 0
          %345 = vmatpush1.bf16.msra.mxu0 0
          %346 = vmatprep.subr.bf16.mxu0 0
          %347 = vmatpush1.bf16.msra.mxu0 0
          %348 = vmatprep.subr.bf16.mxu0 0
          %349 = vmatpush1.bf16.msra.mxu0 0
          %350 = vmatprep.subr.bf16.mxu0 0
          %351 = vmatpush1.bf16.msra.mxu0 0
          %352 = vmatprep.subr.bf16.mxu0 0
          %353 = vmatpush1.bf16.msra.mxu0 0
          %354 = vmatprep.subr.bf16.mxu0 0
          %355 = vmatpush1.bf16.msra.mxu0 0
          %356 = vmatprep.subr.bf16.mxu0 0
          %357 = vmatpush1.bf16.msra.mxu0 0
          %358 = vmatprep.subr.bf16.mxu0 0
          %359 = vmatpush1.bf16.msra.mxu0 0
          %360 = vmatprep.subr.bf16.mxu0 0
          %361 = vmatpush1.bf16.msra.mxu0 0
          %362 = vmatprep.subr.bf16.mxu0 0
          %363 = vmatpush1.bf16.msra.mxu0 0
          %364 = vmatprep.subr.bf16.mxu0 0
          %365 = vmatpush1.bf16.msra.mxu0 0
          %366 = vmatprep.mubr.bf16.mxu0 0
          %367 = vmatmul.mubr.bf16.gmra.mrb[0].mxu0 %v332
          %v368 = vpop.f32.mrb[0].mxu0
          %v369 = vadd.f32 0.0, %v368
          %v370 = vpop.f32.mrb[0].mxu0
          %v371 = vpop.f32.mrb[0].mxu0
          %v372 = vadd.f32 0.0, %v371
          %v373 = vpop.f32.mrb[0].mxu0
          %374 = vdwg.mxu0
          %v375 = vpack.c.bf16 %v372, %v369
          %v376 = vlaneseq
          %v377 = vand.u32 %v376, 127
          %vm378 = vcmp.eq.s32.totalorder %v377, 32
          %v379 = vsel %vm378, 1, 0
          %vm380 = vcmp.eq.s32.totalorder %v379, 1
          %vm381 = vmpackc.low %vm380, %vm380
          %v382 = vsel %vm381, 65537, 0
          %v383 = vlaneseq
          %v384 = vshrl.u32 %v383, 7
          %v385 = vsub.s32 0, %v384
          %v386 = vrot.slane %v382, %v385
          %vm387 = vcmp.ne.s16.totalorder %v386, 0
          %v388 = vsel %vm387, 1065369472, %v375
          %389 = vst [vmem:[#allocation2] sm:$0xff] %v388
        $region56: #{tpu_custom_call.1} parent=35 // pred_fallthru
          _
        %v390 = vld [vmem:[%s263] sm:$0xff]
        %v391 = vld [vmem:[%s263 + $0x8] sm:$0xff]
        %v392 = vpack.c.bf16 %v391, %v390
        %v393 = vld [vmem:[#allocation2] sm:$0xff]
        %vm394 = vcmask 130048
        %v396 = vsel %vm394, %v392, 0
        %398 = vmatprep.subr.bf16.mxu0 0
        %399 = vmatpush1.bf16.msra.mxu0 %v393
        %400 = vmatprep.subr.bf16.mxu0 0
        %401 = vmatpush1.bf16.msra.mxu0 0
        %402 = vmatprep.subr.bf16.mxu0 0
        %403 = vmatpush1.bf16.msra.mxu0 0
        %404 = vmatprep.subr.bf16.mxu0 0
        %405 = vmatpush1.bf16.msra.mxu0 0
        %406 = vmatprep.subr.bf16.mxu0 0
        %407 = vmatpush1.bf16.msra.mxu0 0
        %408 = vmatprep.subr.bf16.mxu0 0
        %409 = vmatpush1.bf16.msra.mxu0 0
        %410 = vmatprep.subr.bf16.mxu0 0
        %411 = vmatpush1.bf16.msra.mxu0 0
        %412 = vmatprep.subr.bf16.mxu0 0
        %413 = vmatpush1.bf16.msra.mxu0 0
        %414 = vmatprep.subr.bf16.mxu0 0
        %415 = vmatpush1.bf16.msra.mxu0 0
        %416 = vmatprep.subr.bf16.mxu0 0
        %417 = vmatpush1.bf16.msra.mxu0 0
        %418 = vmatprep.subr.bf16.mxu0 0
        %419 = vmatpush1.bf16.msra.mxu0 0
        %420 = vmatprep.subr.bf16.mxu0 0
        %421 = vmatpush1.bf16.msra.mxu0 0
        %422 = vmatprep.subr.bf16.mxu0 0
        %423 = vmatpush1.bf16.msra.mxu0 0
        %424 = vmatprep.subr.bf16.mxu0 0
        %425 = vmatpush1.bf16.msra.mxu0 0
        %426 = vmatprep.subr.bf16.mxu0 0
        %427 = vmatpush1.bf16.msra.mxu0 0
        %428 = vmatprep.subr.bf16.mxu0 0
        %429 = vmatpush1.bf16.msra.mxu0 0
        %430 = vmatprep.mubr.bf16.mxu0 0
        %431 = vmatmul.mubr.bf16.gmra.mrb[0].mxu0 %v396
        %v432 = vpop.f32.mrb[0].mxu0
        %v433 = vadd.f32 0.0, %v432
        %v434 = vpop.f32.mrb[0].mxu0
        %v435 = vpop.f32.mrb[0].mxu0
        %v436 = vadd.f32 0.0, %v435
        %v437 = vpop.f32.mrb[0].mxu0
        %438 = vdwg.mxu0
        %v439 = vadd.f32 %v433, 1.0
        %v440 = vadd.f32 %v436, 1.0
        %v441 = vrcp.pop %v439
        %v442 = vrcp.pop %v440
        %444 = vset.pattern.permute.xlu0 32
        %445 = vperm.xlu0 %444, %v441
        %v446 = vpop.permute.xlu0 %445
        %449 = vset.pattern.permute.xlu0 32
        %450 = vperm.xlu0 %449, %v442
        %v451 = vpop.permute.xlu0 %450
        %v453 = vmul.f32 %v433, %v446
        %v454 = vmul.f32 %v436, %v451
        %v455 = vld [vmem:[#allocation9] sm:$0x1]
        %v457 = vlaneseq
        %v458 = vshrl.u32 %v457, 7
        %v459 = vsub.s32 0, %v458
        %v460 = vrot.slane %v455, %v459
        %v462 = vadd.f32 %v453, %v460
        %v463 = vadd.f32 %v454, %v460
        %464 = vst [vmem:[%s300] sm:$0xff] %v462
        %465 = vst [vmem:[%s300 + $0x8] sm:$0xff] %v463
        %s466 = sand.u32 %s143, 1
        %s467 = scalar_lea.sflag [#allocation5], %s466
        %s468 = sand.u32 %s143, 1
        %s469 = smul.addr %s468, 16
        %s470 = scalar_lea.vmem [#allocation11], %s469
        // Predicated region
        $region57: #{tpu_custom_call.1} parent=35 // pred_check
          %p471 = pneg %p153
        $region58: #{tpu_custom_call.1} parent=35 // pred_check_branch
          %473 = sbr.rel (%p471) target = $region60
        $region59: #{tpu_custom_call.1} parent=35 // pred_region
          %s474 = smul.u32 2, %s30
          %s476 = ssub.s32 256, 256
          %477 = vsyncadd %s467, %s476
          %s478 = smul.addr %s29, 2
          %s479 = sadd.s32 %s474, %s478
          %s480 = smul.addr %s479, 128
          %s481 = scalar_lea.hbm %s4, %s480
          %s482 = sshll.u32 %s470, 4
          %s483 = int_to_ptr.vmem [resolvable:$true] %s482
          %488 = dma.vmem_to_hbm [thread:$0]  %s483, 256, %s481, %s467, 128, 128, 8
        $region60: #{tpu_custom_call.1} parent=35 // pred_fallthru
          _
      $region36: #{tpu_custom_call.1} parent=5 // pred_fallthru
        _
      %p489 = scmp.le.s32.totalorder 2, %s20
      // Predicated region
      $region61: #{tpu_custom_call.1} parent=5 // pred_check
        %p490 = pneg %p489
      $region62: #{tpu_custom_call.1} parent=5 // pred_check_branch
        %492 = sbr.rel (%p490) target = $region64
      $region63: #{tpu_custom_call.1} parent=5 // pred_region
        %s493 = ssub.s32 %s20, 2
        // Predicated region
        $region65: #{tpu_custom_call.1} parent=63 // pred_check
          %p494 = pneg %p159
        $region66: #{tpu_custom_call.1} parent=63 // pred_check_branch
          %496 = sbr.rel (%p494) target = $region68
        $region67: #{tpu_custom_call.1} parent=63 // pred_region
          %s497 = sand.u32 %s144, 1
          %s498 = scalar_lea.sflag [#allocation5], %s497
          %s499 = sand.u32 %s144, 1
          %s500 = smul.addr %s499, 16
          %s501 = scalar_lea.vmem [#allocation11], %s500
          %502 = dma.done %s498, 256
        $region68: #{tpu_custom_call.1} parent=63 // pred_fallthru
          _
      $region64: #{tpu_custom_call.1} parent=5 // pred_fallthru
        _
    $region6: #{tpu_custom_call.1} parent=1 // loop_footer
      %s24 = sadd.s32 1, %s20
    $region7: #{tpu_custom_call.1} parent=1 // loop_footer_branch
      %19 = sbr.rel target = $region3
    $region8: #{tpu_custom_call.1} parent=1 // loop_exit
      _
    %503 = vsyncpa [#allocation4], 1
    %s504 = scalar_lea.sflag [#allocation4], 1
    %505 = vsyncpa %s504, 1
    %506 = vsyncpa [#allocation7], 1
    %s507 = scalar_lea.sflag [#allocation7], 1
    %508 = vsyncpa %s507, 1
    %509 = vsyncpa [#allocation10], 1
    %510 = vsyncpa [#allocation5], 1
    %s511 = scalar_lea.sflag [#allocation5], 1
    %512 = vsyncpa %s511, 1

</llo_original>
